<compile_context>
chip_gen: v7x
topology: tpu7x:2x2x1
jax: 0.10.0
libtpu: 0.0.40
codegen_flags: <defaults>
</compile_context>

<pallas_src>
import functools

import jax
import jax.numpy as jnp
from jax.experimental import pallas as pl
from jax.experimental.pallas import tpu as pltpu

IN_F = 10           # nn.Linear(10, 10) in_features
OUT_F = 10          # out_features
IN_PAD = 16         # 10 features + 1 bias column, padded to a multiple of 8
OUT_PAD = 128       # lane-aligned output width (unmasked stores)
TM = 8              # row tile (f32 sublane multiple)
BIAS_COL = IN_F     # column of x holding the constant 1.0 (bias term)


def aug_linear_kernel(x_ref, wt_ref, y_ref):
    # x_ref : VMEM (TM, IN_PAD)       f32  cols[0:10]=rand, col 10 = 1.0, rest 0
    # wt_ref: VMEM (IN_PAD, OUT_PAD)  f32  rows[0:10]=W.T, row 10 = b, rest 0
    # y_ref : VMEM (TM, OUT_PAD)      f32  lane-dense -> unmasked vst
    y_ref[...] = jnp.dot(x_ref[...], wt_ref[...],
                         preferred_element_type=jnp.float32)


def _aug_matmul(x_pad, wt_aug):
    m_pad = x_pad.shape[0]
    return pl.pallas_call(
        aug_linear_kernel,
        out_shape=jax.ShapeDtypeStruct((m_pad, OUT_PAD), jnp.float32),
        grid=(m_pad // TM,),
        in_specs=[
            pl.BlockSpec((TM, IN_PAD), lambda i: (i, 0)),
            pl.BlockSpec((IN_PAD, OUT_PAD), lambda i: (0, 0)),  # weight resident
        ],
        out_specs=pl.BlockSpec((TM, OUT_PAD), lambda i: (i, 0)),
        compiler_params=pltpu.CompilerParams(
            dimension_semantics=("parallel",)),  # shard row tiles across TCs (v7x)
    )(x_pad, wt_aug)


@functools.partial(jax.jit, static_argnames=("batch",))
def _fused_forward(key, wt_aug, batch):
    """Generates `batch` independent torch.rand(1,10)-style rows and runs the
    Linear on all of them in a single pallas_call.  Returns (x, y)."""
    m_pad = pl.cdiv(batch, TM) * TM           # static Python int
    u = jax.random.uniform(key, (m_pad, IN_F), jnp.float32)   # torch.rand analogue
    # Augmented input: [ u | 1 | 0 ... 0 ]  -> picks up the bias row of wt_aug.
    x_pad = jnp.concatenate(
        [u,
         jnp.ones((m_pad, 1), jnp.float32),
         jnp.zeros((m_pad, IN_PAD - IN_F - 1), jnp.float32)],
        axis=1)
    y_pad = _aug_matmul(x_pad, wt_aug)
    return u[:batch], y_pad[:batch, :OUT_F]


class ModelWithModuleListPallas:
    """Mirrors ModelWithModuleList: only module[0] (Linear(10,10)) is used in
    forward(); other_layer's parameters exist but are never touched."""

    def __init__(self, key):
        k_ow, k_ob, k_w, k_b = jax.random.split(key, 4)
        bound = 1.0 / float(jnp.sqrt(jnp.float32(IN_F)))  # torch Linear init range
        # other_layer (unused in forward, kept for parity with the module)
        self.other_w = jax.random.uniform(k_ow, (OUT_F, IN_F), jnp.float32,
                                          -bound, bound)
        self.other_b = jax.random.uniform(k_ob, (OUT_F,), jnp.float32,
                                          -bound, bound)
        # module[0]
        self.w = jax.random.uniform(k_w, (OUT_F, IN_F), jnp.float32,
                                    -bound, bound)
        self.b = jax.random.uniform(k_b, (OUT_F,), jnp.float32,
                                    -bound, bound)

        # Hoisted, lane-dense augmented weight: rows[0:10] = W.T, row 10 = b.
        wt_aug = jnp.zeros((IN_PAD, OUT_PAD), jnp.float32)
        wt_aug = wt_aug.at[:IN_F, :OUT_F].set(self.w.T)
        wt_aug = wt_aug.at[BIAS_COL, :OUT_F].set(self.b)
        self.wt_aug = wt_aug

    def forward(self, key):
        """Matches the nn.Module: one random (1,10) row through Linear(10,10).
        Takes a device-resident PRNG key (no per-call host seed transfer)."""
        _, y = _fused_forward(key, self.wt_aug, 1)
        return y

    def forward_batched(self, key, batch):
        """Amortized path: many independent forward() draws in one kernel."""
        return _fused_forward(key, self.wt_aug, batch)


if __name__ == "__main__":
    root = jax.random.PRNGKey(0)
    k_init, k_fwd, k_batch = jax.random.split(root, 3)
    model = ModelWithModuleListPallas(k_init)

    # --- public path: matches the nn.Module (single random row) ---
    out = jax.block_until_ready(model.forward(k_fwd))
    assert out.shape == (1, OUT_F)

    x1, y1 = jax.block_until_ready(_fused_forward(k_fwd, model.wt_aug, 1))
    ref1 = jnp.dot(x1, model.w.T, precision=jax.lax.Precision.HIGHEST) + model.b
    assert bool(jnp.all(x1 >= 0.0)) and bool(jnp.all(x1 < 1.0))
    assert jnp.allclose(out, ref1, atol=2e-2, rtol=2e-2)
    assert bool(jnp.array_equal(out, y1))

    # --- batched path: 16 independent draws, grid=(2,) over TM=8 row tiles ---
    xb, yb = jax.block_until_ready(model.forward_batched(k_batch, 16))
    assert xb.shape == (16, IN_F) and yb.shape == (16, OUT_F)
    assert bool(jnp.all(xb >= 0.0)) and bool(jnp.all(xb < 1.0))
    refb = jnp.dot(xb, model.w.T, precision=jax.lax.Precision.HIGHEST) + model.b
    assert jnp.allclose(yb, refb, atol=2e-2, rtol=2e-2)

    print("KERNEL_OK")
</pallas_src>

<mosaic_0001>
module attributes {stable_mosaic.version = 11 : i64} {
  func.func @aug_linear_kernel(%arg0: i32, %arg1: memref<8x16xf32, #tpu.memory_space<vmem>>, %arg2: memref<16x128xf32, #tpu.memory_space<vmem>>, %arg3: memref<8x128xf32, #tpu.memory_space<vmem>>) attributes {dimension_semantics = [#tpu.dimension_semantics<parallel>], iteration_bounds = array<i64: 1>, scalar_prefetch = 0 : i64, scratch_operands = 0 : i64, tpu.core_type = #tpu.core_type<tc>, window_params = [{transform_indices = @transform_0, window_bounds = array<i64: 8, 16>}, {pipeline_mode = #tpu.pipeline_mode<synchronous>, transform_indices = @transform_1, window_bounds = array<i64: 16, 128>}, {transform_indices = @transform_2, window_bounds = array<i64: 8, 128>}]} {
    %c0 = arith.constant 0 : index
    %c0_0 = arith.constant 0 : index
    %0 = vector.load %arg1[%c0, %c0_0] : memref<8x16xf32, #tpu.memory_space<vmem>>, vector<8x16xf32>
    %c0_1 = arith.constant 0 : index
    %c0_2 = arith.constant 0 : index
    %1 = vector.load %arg2[%c0_1, %c0_2] : memref<16x128xf32, #tpu.memory_space<vmem>>, vector<16x128xf32>
    %cst = arith.constant dense<0.000000e+00> : vector<8x128xf32>
    %2 = tpu.matmul %0, %1, %cst {dimension_numbers = #tpu.dot_dimension_numbers<[1], [0], [0], [1], [0, 0, 1, 1], [], []>} : vector<8x16xf32>, vector<16x128xf32>, vector<8x128xf32> -> vector<8x128xf32>
    %c0_3 = arith.constant 0 : index
    %c0_4 = arith.constant 0 : index
    %3 = vector.load %arg3[%c0_3, %c0_4] : memref<8x128xf32, #tpu.memory_space<vmem>>, vector<8x128xf32>
    tpu.vector_store %arg3[%c0_3, %c0_4], %2 {strides = array<i32>} : memref<8x128xf32, #tpu.memory_space<vmem>>, vector<8x128xf32>,
    return
  }
  func.func @transform_0(%arg0: i32) -> (i32, i32) {
    %c0_i32 = arith.constant 0 : i32
    %c0_i32_0 = arith.constant 0 : i32
    return %arg0, %c0_i32 : i32, i32
  }
  func.func @transform_1(%arg0: i32) -> (i32, i32) {
    %c0_i32 = arith.constant 0 : i32
    %c0_i32_0 = arith.constant 0 : i32
    %c0_i32_1 = arith.constant 0 : i32
    return %c0_i32, %c0_i32_0 : i32, i32
  }
  func.func @transform_2(%arg0: i32) -> (i32, i32) {
    %c0_i32 = arith.constant 0 : i32
    %c0_i32_0 = arith.constant 0 : i32
    return %arg0, %c0_i32 : i32, i32
  }
}

</mosaic_0001>

<llo_original>
// kernel: _fused_forward.1
$region0: #{_fused_forward.1}
  #allocation0 [shape = 'u32[]', space=smem, size = 0x4, offset = 0x4, fixed_abs, tag = 'smem constant byte address 0x4 - core index']
  #allocation1 [shape = 'u32[144,128]{1,0:T(1,128)}', space=vmem, size = 0x12000, scoped, tag = 'internal scratch']
  %s0 = inlined_call_operand.vmem [shape: f32[8,16], index: 0, kind: input, shape index: {}]
  %s1 = inlined_call_operand.vmem [shape: f32[16,128], index: 1, kind: input, shape index: {}]
  %s2 = inlined_call_operand.vmem [shape: f32[8,128], index: 2, kind: output, shape index: {}]
  %s3 = sld [smem:[#allocation0]]
  $region18: #{_fused_forward.1} parent=0
    _
  %s5 = ssub.s32 1, %s3
  %s6 = scalar_select 0, %s5, %s3
  // Predicated region
  $region2: #{_fused_forward.1} parent=0 // pred_check
    _
  $region3: #{_fused_forward.1} parent=0 // pred_check_branch
    %8 = sbr.rel (0) target = $region5
  $region4: #{_fused_forward.1} parent=0 // pred_region
    _
  $region5: #{_fused_forward.1} parent=0 // pred_fallthru
    _
  // Predicated region
  $region6: #{_fused_forward.1} parent=0 // pred_check
    _
  $region7: #{_fused_forward.1} parent=0 // pred_check_branch
    %10 = sbr.rel (0) target = $region9
  $region8: #{_fused_forward.1} parent=0 // pred_region
    _
  $region9: #{_fused_forward.1} parent=0 // pred_fallthru
    _
  %v11 = vld [vmem:[%s0] sm:$0xff]
  %v12 = vld [vmem:[%s1] sm:$0xff]
  %v13 = vld [vmem:[%s1 + $0x8] sm:$0xff]
  %vm14 = vcmask 130048
  %v16 = vsel %vm14, %v11, 0
  %18 = vmatprep.subr.mxu0 0.0
  %19 = vmatpush1.msra.mxu0 %v12
  %20 = vmatprep.subr.mxu0 0.0
  %21 = vmatpush1.msra.mxu0 %v13
  %22 = vmatprep.subr.mxu0 0.0
  %23 = vmatpush1.msra.mxu0 0.0
  %24 = vmatprep.subr.mxu0 0.0
  %25 = vmatpush1.msra.mxu0 0.0
  %26 = vmatprep.subr.mxu0 0.0
  %27 = vmatpush1.msra.mxu0 0.0
  %28 = vmatprep.subr.mxu0 0.0
  %29 = vmatpush1.msra.mxu0 0.0
  %30 = vmatprep.subr.mxu0 0.0
  %31 = vmatpush1.msra.mxu0 0.0
  %32 = vmatprep.subr.mxu0 0.0
  %33 = vmatpush1.msra.mxu0 0.0
  %34 = vmatprep.subr.mxu0 0.0
  %35 = vmatpush1.msra.mxu0 0.0
  %36 = vmatprep.subr.mxu0 0.0
  %37 = vmatpush1.msra.mxu0 0.0
  %38 = vmatprep.subr.mxu0 0.0
  %39 = vmatpush1.msra.mxu0 0.0
  %40 = vmatprep.subr.mxu0 0.0
  %41 = vmatpush1.msra.mxu0 0.0
  %42 = vmatprep.subr.mxu0 0.0
  %43 = vmatpush1.msra.mxu0 0.0
  %44 = vmatprep.subr.mxu0 0.0
  %45 = vmatpush1.msra.mxu0 0.0
  %46 = vmatprep.subr.mxu0 0.0
  %47 = vmatpush1.msra.mxu0 0.0
  %48 = vmatprep.subr.mxu0 0.0
  %49 = vmatpush1.msra.mxu0 0.0
  %50 = vmatprep.subr.mxu0 0.0
  %51 = vmatpush1.msra.mxu0 0.0
  %52 = vmatprep.subr.mxu0 0.0
  %53 = vmatpush1.msra.mxu0 0.0
  %54 = vmatprep.subr.mxu0 0.0
  %55 = vmatpush1.msra.mxu0 0.0
  %56 = vmatprep.subr.mxu0 0.0
  %57 = vmatpush1.msra.mxu0 0.0
  %58 = vmatprep.subr.mxu0 0.0
  %59 = vmatpush1.msra.mxu0 0.0
  %60 = vmatprep.subr.mxu0 0.0
  %61 = vmatpush1.msra.mxu0 0.0
  %62 = vmatprep.subr.mxu0 0.0
  %63 = vmatpush1.msra.mxu0 0.0
  %64 = vmatprep.subr.mxu0 0.0
  %65 = vmatpush1.msra.mxu0 0.0
  %66 = vmatprep.subr.mxu0 0.0
  %67 = vmatpush1.msra.mxu0 0.0
  %68 = vmatprep.subr.mxu0 0.0
  %69 = vmatpush1.msra.mxu0 0.0
  %70 = vmatprep.subr.mxu0 0.0
  %71 = vmatpush1.msra.mxu0 0.0
  %72 = vmatprep.subr.mxu0 0.0
  %73 = vmatpush1.msra.mxu0 0.0
  %74 = vmatprep.subr.mxu0 0.0
  %75 = vmatpush1.msra.mxu0 0.0
  %76 = vmatprep.subr.mxu0 0.0
  %77 = vmatpush1.msra.mxu0 0.0
  %78 = vmatprep.subr.mxu0 0.0
  %79 = vmatpush1.msra.mxu0 0.0
  %80 = vmatprep.subr.mxu0 0.0
  %81 = vmatpush1.msra.mxu0 0.0
  %82 = vmatprep.mubr.f32.mxu0 0.0
  %83 = vmatmul.mubr.f32.gmra.mrb[0].mxu0 %v16
  %v84 = vpop.f32.mrb[0].mxu0
  %v85 = vadd.f32 0.0, %v84
  %v86 = vpop.f32.mrb[0].mxu0
  %87 = vdwg.mxu0
  %88 = vst [vmem:[%s2] sm:$0xff] %v85
  // Predicated region
  $region10: #{_fused_forward.1} parent=0 // pred_check
    _
  $region11: #{_fused_forward.1} parent=0 // pred_check_branch
    %90 = sbr.rel (0) target = $region13
  $region12: #{_fused_forward.1} parent=0 // pred_region
    _
  $region13: #{_fused_forward.1} parent=0 // pred_fallthru
    _
  // Predicated region
  $region14: #{_fused_forward.1} parent=0 // pred_check
    _
  $region15: #{_fused_forward.1} parent=0 // pred_check_branch
    %92 = sbr.rel (0) target = $region17
  $region16: #{_fused_forward.1} parent=0 // pred_region
    _
  $region17: #{_fused_forward.1} parent=0 // pred_fallthru
    _

</llo_original>
